<compile_context>
chip_gen: v5e
topology: v5e:2x2
jax: 0.10.0
libtpu: 0.0.40
codegen_flags: <defaults>
</compile_context>

<pallas_src>
import jax
import jax.numpy as jnp
from jax import lax
from jax.experimental import pallas as pl
from jax.experimental.pallas import tpu as pltpu

# -------------------- synthetic config (config.HIDDEN etc.) --------------------
HIDDEN = 32            # config.HIDDEN
OBS = 64               # flat (packed) observation width fed to the encoder
T = 4                  # unrolled time steps
B = 2                  # env batch (lstm_state[0].shape[1] after transpose)
N = T * B              # rows in x  (len(x))
NUM_HEADS = 3          # number of flat action heads (sum over nmmo.Action.edges args)
A = 8                  # logits per head (equal-sized heads for this synthetic Output)
HEAD_W = 1 + NUM_HEADS * A   # 25 packed head columns: [value | head0 | head1 | head2]
HEAD_W_PAD = 128             # lane-dense padded width of the fused head matmul
OUT_W = 128                  # lane-dense packed output width
OUT_ROWS = N + 2 * B         # N stats rows + B hT rows + B cT rows

assert 4 * HIDDEN == HEAD_W_PAD == OUT_W  # packed bias rows share one 128-lane width

VMEM_SPEC = pl.BlockSpec(memory_space=pltpu.MemorySpace.VMEM)


# --------------------------- fused Agent forward kernel --------------------------
def _agent_kernel(x_ref, done_ref, action_ref, hc0_ref,
                  w_enc_ref, w_ih_ref, w_hh_ref, w_head_ref, biases_ref,
                  out_ref, head_scr):
    H = HIDDEN
    bf16 = jnp.bfloat16
    f32 = jnp.float32

    # packed biases: row0 = encoder bias, row1 = lstm bias, row2 = fused head bias
    b_enc = biases_ref[0:1, 0:H]                                  # (1, H)
    b_lstm = biases_ref[1:2, :]                                   # (1, 4H)
    b_head = biases_ref[2:3, :]                                   # (1, 128), 0 past HEAD_W

    # ---- encoder: dense + tanh (stand-in for io.Input + policy.Simple) ----
    x_bf = x_ref[...].astype(bf16)
    hid_all = jnp.tanh(
        jnp.dot(x_bf, w_enc_ref[...], preferred_element_type=f32) + b_enc)     # (N, H)

    # ---- hoist the input projection out of the recurrence ----
    gates_x = jnp.dot(hid_all.astype(bf16), w_ih_ref[...],
                      preferred_element_type=f32) + b_lstm                      # (N, 4H)

    w_hh = w_hh_ref[...]                                          # (H, 4H)   bf16
    w_head = w_head_ref[...]                                      # (H, 128)  bf16
    done = done_ref[...]                                          # (N, 1)
    h = hc0_ref[0:B, :]                                           # (B, H)
    c = hc0_ref[B:2 * B, :]                                       # (B, H)

    # ---- LSTM recurrence, statically unrolled (T = 4), gate order (i,f,g,o) ----
    # TODO(synk): explicit pltpu.matmul_push_rhs to keep W_hh resident across
    #             steps was considered; left to Mosaic's scheduler here.
    for t in range(T):
        mask = 1.0 - done[t * B:(t + 1) * B, :]                   # (B, 1)
        h = h * mask
        c = c * mask
        gates = gates_x[t * B:(t + 1) * B, :] + jnp.dot(
            h.astype(bf16), w_hh, preferred_element_type=f32)     # (B, 4H)
        sig = jax.nn.sigmoid(gates)                               # full-block EUP
        tg = jnp.tanh(gates)                                      # full-block EUP
        ig = sig[:, 0:H]
        fg = sig[:, H:2 * H]
        gg = tg[:, 2 * H:3 * H]
        og = sig[:, 3 * H:4 * H]
        c = fg * c + ig * gg
        h = og * jnp.tanh(c)
        # fused value+policy head matmul interleaved under the recurrence;
        # stored to VMEM scratch (lane-dense, unmasked stores).
        head_scr[t * B:(t + 1) * B, :] = jnp.dot(
            h.astype(bf16), w_head, preferred_element_type=f32) + b_head

    head_all = head_scr[...]                                      # (N, 128)
    value = head_all[:, 0:1]                                      # (N, 1)

    # ---- per-head log-softmax / log_prob / entropy ----
    action = action_ref[...]                                      # (N, NUM_HEADS) int32
    iota = lax.broadcasted_iota(jnp.int32, (N, A), 1)             # (N, A)

    lp_sum = jnp.zeros((N, 1), f32)
    ent_sum = jnp.zeros((N, 1), f32)
    for k in range(NUM_HEADS):                                    # static unroll
        logits = head_all[:, 1 + k * A:1 + (k + 1) * A]           # (N, A)
        m = jnp.max(logits, axis=-1, keepdims=True)
        z = logits - m
        ez = jnp.exp(z)                                           # reused for p
        s = jnp.sum(ez, axis=-1, keepdims=True)
        logp = z - jnp.log(s)                                     # log_softmax
        p = ez * pl.reciprocal(s, approx=True)                    # EUP recip slot
        onehot = (iota == action[:, k:k + 1]).astype(f32)         # in-kernel one-hot
        lp_sum = lp_sum + jnp.sum(onehot * logp, axis=-1, keepdims=True)
        ent_sum = ent_sum - jnp.sum(p * logp, axis=-1, keepdims=True)

    # ---- pack everything into ONE lane-dense (N+2B, 128) output block ----
    out_ref[0:N, :] = jnp.concatenate(
        [value, lp_sum, ent_sum, jnp.zeros((N, OUT_W - 3), f32)], axis=-1)
    pad = jnp.zeros((B, OUT_W - H), f32)
    out_ref[N:N + B, :] = jnp.concatenate([h, pad], axis=-1)      # hT rows
    out_ref[N + B:N + 2 * B, :] = jnp.concatenate([c, pad], axis=-1)  # cT rows


# ------------------------- one-time parameter packing ---------------------------
def prepare_params(params):
    """One-time packing of Agent parameters into lane-dense bf16 kernel operands."""
    bf16 = jnp.bfloat16
    H = HIDDEN
    # fuse value head (H,1) with the NUM_HEADS policy heads (H, NUM_HEADS*A),
    # padded out to 128 lanes
    w_p_packed = jnp.transpose(params['w_p'], (1, 0, 2)).reshape(H, NUM_HEADS * A)
    w_head = jnp.zeros((H, HEAD_W_PAD), jnp.float32)
    w_head = w_head.at[:, 0:1].set(params['w_v'])
    w_head = w_head.at[:, 1:HEAD_W].set(w_p_packed)
    # pack all biases into one (3, 128) block (one DMA instead of four)
    biases = jnp.zeros((3, 4 * H), jnp.float32)
    biases = biases.at[0, 0:H].set(params['b_enc'][0])
    biases = biases.at[1, :].set(params['b_lstm'][0])
    biases = biases.at[2, 0:1].set(params['b_v'][0])
    biases = biases.at[2, 1:HEAD_W].set(params['b_p'].reshape(NUM_HEADS * A))
    return {
        'w_enc': params['w_enc'].astype(bf16),     # (OBS, H)
        'w_ih': params['w_ih'].astype(bf16),       # (H, 4H)
        'w_hh': params['w_hh'].astype(bf16),       # (H, 4H)
        'w_head': w_head.astype(bf16),             # (H, 128)
        'biases': biases,                          # (3, 128) f32
    }


# --------------------------------- Agent.forward --------------------------------
@jax.jit
def agent_forward(packed, x, lstm_state, done, action):
    """Mirrors Agent.forward(x, lstm_state, done, action) with action given."""
    h0, c0 = lstm_state                                   # (B, layers=1, H) each
    hc0 = jnp.concatenate([h0[:, 0, :], c0[:, 0, :]], axis=0)   # (2B, H)
    done_2d = done.reshape(N, 1)

    out = pl.pallas_call(
        _agent_kernel,
        out_shape=jax.ShapeDtypeStruct((OUT_ROWS, OUT_W), jnp.float32),
        in_specs=[VMEM_SPEC] * 9,
        out_specs=VMEM_SPEC,
        scratch_shapes=[pltpu.VMEM((N, HEAD_W_PAD), jnp.float32)],
    )(x, done_2d, action, hc0,
      packed['w_enc'], packed['w_ih'], packed['w_hh'],
      packed['w_head'], packed['biases'])

    value = out[0:N, 0:1]                                 # (N, 1)
    logprob = out[0:N, 1]                                 # (N,)
    entropy = out[0:N, 2]                                 # (N,)
    hT = out[N:N + B, 0:HIDDEN].reshape(B, 1, HIDDEN)
    cT = out[N + B:N + 2 * B, 0:HIDDEN].reshape(B, 1, HIDDEN)
    # lstm_state returned in (batch, layers, hidden) layout, as the module does
    return action, logprob, entropy, value, (hT, cT)


# ---------------------------- pure-JAX reference (check) ------------------------
def reference_forward(params, x, lstm_state, done, action):
    h = jnp.transpose(lstm_state[0], (1, 0, 2))[0]
    c = jnp.transpose(lstm_state[1], (1, 0, 2))[0]
    hid = jnp.tanh(x @ params['w_enc'] + params['b_enc']).reshape(T, B, HIDDEN)
    done_tb = done.reshape(T, B)
    outs = []
    H = HIDDEN
    for t in range(T):
        m = (1.0 - done_tb[t])[:, None]
        h, c = h * m, c * m
        g = hid[t] @ params['w_ih'] + h @ params['w_hh'] + params['b_lstm']
        i = jax.nn.sigmoid(g[:, :H]); f = jax.nn.sigmoid(g[:, H:2 * H])
        gg = jnp.tanh(g[:, 2 * H:3 * H]); o = jax.nn.sigmoid(g[:, 3 * H:])
        c = f * c + i * gg
        h = o * jnp.tanh(c)
        outs.append(h)
    nh = jnp.concatenate(outs, 0)
    value = nh @ params['w_v'] + params['b_v']
    lp = jnp.zeros((N,)); ent = jnp.zeros((N,))
    for k in range(NUM_HEADS):
        logits = nh @ params['w_p'][k] + params['b_p'][k]
        logp = jax.nn.log_softmax(logits, axis=-1)
        p = jnp.exp(logp)
        lp = lp + jnp.take_along_axis(logp, action[:, k:k + 1], axis=-1)[:, 0]
        ent = ent - jnp.sum(p * logp, axis=-1)
    return lp, ent, value, h, c


# ------------------------------------- main --------------------------------------
if __name__ == "__main__":
    key = jax.random.PRNGKey(0)
    ks = jax.random.split(key, 12)
    orth = jax.nn.initializers.orthogonal()

    params = {
        'w_enc': jax.random.normal(ks[0], (OBS, HIDDEN), jnp.float32) * 0.1,
        'b_enc': jnp.zeros((1, HIDDEN), jnp.float32),
        # nn.LSTM: orthogonal weights, zero biases (per Agent.__init__)
        'w_ih': orth(ks[1], (4 * HIDDEN, HIDDEN), jnp.float32).T,   # (H, 4H)
        'w_hh': orth(ks[2], (4 * HIDDEN, HIDDEN), jnp.float32).T,   # (H, 4H)
        'b_lstm': jnp.zeros((1, 4 * HIDDEN), jnp.float32),
        # value = nn.Linear(HIDDEN, 1)
        'w_v': jax.random.normal(ks[3], (HIDDEN, 1), jnp.float32) * 0.1,
        'b_v': jnp.zeros((1, 1), jnp.float32),
        # synthetic io.Output: one linear head per flat action arg
        'w_p': jax.random.normal(ks[4], (NUM_HEADS, HIDDEN, A), jnp.float32) * 0.1,
        'b_p': jnp.zeros((NUM_HEADS, 1, A), jnp.float32),
    }
    packed = prepare_params(params)     # one-time packing (not on the per-call path)

    x = jax.random.normal(ks[5], (N, OBS), jnp.float32)
    h0 = jax.random.normal(ks[6], (B, 1, HIDDEN), jnp.float32) * 0.5
    c0 = jax.random.normal(ks[7], (B, 1, HIDDEN), jnp.float32) * 0.5
    done = (jax.random.uniform(ks[8], (N,)) < 0.3).astype(jnp.float32)
    action = jax.random.randint(ks[9], (N, NUM_HEADS), 0, A, dtype=jnp.int32)

    act_out, logprob, entropy, value, new_state = agent_forward(
        packed, x, (h0, c0), done, action)
    jax.block_until_ready((act_out, logprob, entropy, value, new_state))

    # correctness check against a pure-JAX f32 reference of the same math;
    # tolerance loosened because the kernel uses bf16 MXU operands.
    lp_ref, ent_ref, val_ref, hT_ref, cT_ref = reference_forward(
        params, x, (h0, c0), done, action)
    assert jnp.allclose(logprob, lp_ref, atol=5e-2), "logprob mismatch"
    assert jnp.allclose(entropy, ent_ref, atol=5e-2), "entropy mismatch"
    assert jnp.allclose(value, val_ref, atol=5e-2), "value mismatch"
    assert jnp.allclose(new_state[0][:, 0], hT_ref, atol=5e-2), "h state mismatch"
    assert jnp.allclose(new_state[1][:, 0], cT_ref, atol=5e-2), "c state mismatch"

    print("KERNEL_OK")
</pallas_src>

<mosaic_0001>
module attributes {stable_mosaic.version = 11 : i64} {
  func.func @_agent_kernel(%arg0: memref<8x64xf32, #tpu.memory_space<vmem>>, %arg1: memref<8x1xf32, #tpu.memory_space<vmem>>, %arg2: memref<8x3xi32, #tpu.memory_space<vmem>>, %arg3: memref<4x32xf32, #tpu.memory_space<vmem>>, %arg4: memref<64x32xbf16, #tpu.memory_space<vmem>>, %arg5: memref<32x128xbf16, #tpu.memory_space<vmem>>, %arg6: memref<32x128xbf16, #tpu.memory_space<vmem>>, %arg7: memref<32x128xbf16, #tpu.memory_space<vmem>>, %arg8: memref<3x128xf32, #tpu.memory_space<vmem>>, %arg9: memref<12x128xf32, #tpu.memory_space<vmem>>, %arg10: memref<8x128xf32, #tpu.memory_space<vmem>>) attributes {dimension_semantics = [], scalar_prefetch = 0 : i64, scratch_operands = 1 : i64, tpu.core_type = #tpu.core_type<tc>} {
    %c0 = arith.constant 0 : index
    %c0_0 = arith.constant 0 : index
    %0 = vector.load %arg8[%c0, %c0_0] : memref<3x128xf32, #tpu.memory_space<vmem>>, vector<1x32xf32>
    %c1 = arith.constant 1 : index
    %c0_1 = arith.constant 0 : index
    %1 = vector.load %arg8[%c1, %c0_1] : memref<3x128xf32, #tpu.memory_space<vmem>>, vector<1x128xf32>
    %c2 = arith.constant 2 : index
    %c0_2 = arith.constant 0 : index
    %2 = vector.load %arg8[%c2, %c0_2] : memref<3x128xf32, #tpu.memory_space<vmem>>, vector<1x128xf32>
    %c0_3 = arith.constant 0 : index
    %c0_4 = arith.constant 0 : index
    %3 = vector.load %arg0[%c0_3, %c0_4] : memref<8x64xf32, #tpu.memory_space<vmem>>, vector<8x64xf32>
    %4 = arith.truncf %3 : vector<8x64xf32> to vector<8x64xbf16>
    %c0_5 = arith.constant 0 : index
    %c0_6 = arith.constant 0 : index
    %5 = vector.load %arg4[%c0_5, %c0_6] : memref<64x32xbf16, #tpu.memory_space<vmem>>, vector<64x32xbf16>
    %cst = arith.constant dense<0.000000e+00> : vector<8x32xf32>
    %6 = tpu.matmul %4, %5, %cst {dimension_numbers = #tpu.dot_dimension_numbers<[1], [0], [0], [1], [0, 0, 1, 1], [], []>} : vector<8x64xbf16>, vector<64x32xbf16>, vector<8x32xf32> -> vector<8x32xf32>
    %7 = vector.broadcast %0 : vector<1x32xf32> to vector<8x32xf32>
    %8 = arith.addf %6, %7 : vector<8x32xf32>
    %9 = math.tanh %8 : vector<8x32xf32>
    %10 = arith.truncf %9 : vector<8x32xf32> to vector<8x32xbf16>
    %c0_7 = arith.constant 0 : index
    %c0_8 = arith.constant 0 : index
    %11 = vector.load %arg5[%c0_7, %c0_8] : memref<32x128xbf16, #tpu.memory_space<vmem>>, vector<32x128xbf16>
    %cst_9 = arith.constant dense<0.000000e+00> : vector<8x128xf32>
    %12 = tpu.matmul %10, %11, %cst_9 {dimension_numbers = #tpu.dot_dimension_numbers<[1], [0], [0], [1], [0, 0, 1, 1], [], []>} : vector<8x32xbf16>, vector<32x128xbf16>, vector<8x128xf32> -> vector<8x128xf32>
    %13 = vector.broadcast %1 : vector<1x128xf32> to vector<8x128xf32>
    %14 = arith.addf %12, %13 : vector<8x128xf32>
    %c0_10 = arith.constant 0 : index
    %c0_11 = arith.constant 0 : index
    %15 = vector.load %arg6[%c0_10, %c0_11] : memref<32x128xbf16, #tpu.memory_space<vmem>>, vector<32x128xbf16>
    %c0_12 = arith.constant 0 : index
    %c0_13 = arith.constant 0 : index
    %16 = vector.load %arg7[%c0_12, %c0_13] : memref<32x128xbf16, #tpu.memory_space<vmem>>, vector<32x128xbf16>
    %c0_14 = arith.constant 0 : index
    %c0_15 = arith.constant 0 : index
    %17 = vector.load %arg1[%c0_14, %c0_15] : memref<8x1xf32, #tpu.memory_space<vmem>>, vector<8x1xf32>
    %c0_16 = arith.constant 0 : index
    %c0_17 = arith.constant 0 : index
    %18 = vector.load %arg3[%c0_16, %c0_17] : memref<4x32xf32, #tpu.memory_space<vmem>>, vector<2x32xf32>
    %c2_18 = arith.constant 2 : index
    %c0_19 = arith.constant 0 : index
    %19 = vector.load %arg3[%c2_18, %c0_19] : memref<4x32xf32, #tpu.memory_space<vmem>>, vector<2x32xf32>
    %20 = vector.extract_strided_slice %17 {offsets = [0, 0], sizes = [2, 1], strides = [1, 1]} : vector<8x1xf32> to vector<2x1xf32>
    %cst_20 = arith.constant 1.000000e+00 : f32
    %21 = vector.broadcast %cst_20 : f32 to vector<2x1xf32>
    %22 = arith.subf %21, %20 : vector<2x1xf32>
    %23 = vector.broadcast %22 : vector<2x1xf32> to vector<2x32xf32>
    %24 = arith.mulf %18, %23 : vector<2x32xf32>
    %25 = vector.broadcast %22 : vector<2x1xf32> to vector<2x32xf32>
    %26 = arith.mulf %19, %25 : vector<2x32xf32>
    %27 = vector.extract_strided_slice %14 {offsets = [0, 0], sizes = [2, 128], strides = [1, 1]} : vector<8x128xf32> to vector<2x128xf32>
    %28 = arith.truncf %24 : vector<2x32xf32> to vector<2x32xbf16>
    %cst_21 = arith.constant dense<0.000000e+00> : vector<2x128xf32>
    %29 = tpu.matmul %28, %15, %cst_21 {dimension_numbers = #tpu.dot_dimension_numbers<[1], [0], [0], [1], [0, 0, 1, 1], [], []>} : vector<2x32xbf16>, vector<32x128xbf16>, vector<2x128xf32> -> vector<2x128xf32>
    %30 = arith.addf %27, %29 : vector<2x128xf32>
    %31 = arith.negf %30 : vector<2x128xf32>
    %32 = math.exp %31 : vector<2x128xf32>
    %cst_22 = arith.constant 1.000000e+00 : f32
    %33 = vector.broadcast %cst_22 : f32 to vector<2x128xf32>
    %34 = arith.addf %33, %32 : vector<2x128xf32>
    %35 = arith.divf %33, %34 : vector<2x128xf32>
    %36 = math.tanh %30 : vector<2x128xf32>
    %37 = vector.extract_strided_slice %35 {offsets = [0, 0], sizes = [2, 32], strides = [1, 1]} : vector<2x128xf32> to vector<2x32xf32>
    %38 = vector.extract_strided_slice %35 {offsets = [0, 32], sizes = [2, 32], strides = [1, 1]} : vector<2x128xf32> to vector<2x32xf32>
    %39 = vector.extract_strided_slice %36 {offsets = [0, 64], sizes = [2, 32], strides = [1, 1]} : vector<2x128xf32> to vector<2x32xf32>
    %40 = vector.extract_strided_slice %35 {offsets = [0, 96], sizes = [2, 32], strides = [1, 1]} : vector<2x128xf32> to vector<2x32xf32>
    %41 = arith.mulf %38, %26 : vector<2x32xf32>
    %42 = arith.mulf %37, %39 : vector<2x32xf32>
    %43 = arith.addf %41, %42 : vector<2x32xf32>
    %44 = math.tanh %43 : vector<2x32xf32>
    %45 = arith.mulf %40, %44 : vector<2x32xf32>
    %46 = arith.truncf %45 : vector<2x32xf32> to vector<2x32xbf16>
    %cst_23 = arith.constant dense<0.000000e+00> : vector<2x128xf32>
    %47 = tpu.matmul %46, %16, %cst_23 {dimension_numbers = #tpu.dot_dimension_numbers<[1], [0], [0], [1], [0, 0, 1, 1], [], []>} : vector<2x32xbf16>, vector<32x128xbf16>, vector<2x128xf32> -> vector<2x128xf32>
    %48 = vector.broadcast %2 : vector<1x128xf32> to vector<2x128xf32>
    %49 = arith.addf %47, %48 : vector<2x128xf32>
    %c0_24 = arith.constant 0 : index
    %c0_25 = arith.constant 0 : index
    %50 = vector.load %arg10[%c0_24, %c0_25] : memref<8x128xf32, #tpu.memory_space<vmem>>, vector<2x128xf32>
    tpu.vector_store %arg10[%c0_24, %c0_25], %49 {strides = array<i32>} : memref<8x128xf32, #tpu.memory_space<vmem>>, vector<2x128xf32>,
    %51 = vector.extract_strided_slice %17 {offsets = [2, 0], sizes = [2, 1], strides = [1, 1]} : vector<8x1xf32> to vector<2x1xf32>
    %cst_26 = arith.constant 1.000000e+00 : f32
    %52 = vector.broadcast %cst_26 : f32 to vector<2x1xf32>
    %53 = arith.subf %52, %51 : vector<2x1xf32>
    %54 = vector.broadcast %53 : vector<2x1xf32> to vector<2x32xf32>
    %55 = arith.mulf %45, %54 : vector<2x32xf32>
    %56 = vector.broadcast %53 : vector<2x1xf32> to vector<2x32xf32>
    %57 = arith.mulf %43, %56 : vector<2x32xf32>
    %58 = vector.extract_strided_slice %14 {offsets = [2, 0], sizes = [2, 128], strides = [1, 1]} : vector<8x128xf32> to vector<2x128xf32>
    %59 = arith.truncf %55 : vector<2x32xf32> to vector<2x32xbf16>
    %cst_27 = arith.constant dense<0.000000e+00> : vector<2x128xf32>
    %60 = tpu.matmul %59, %15, %cst_27 {dimension_numbers = #tpu.dot_dimension_numbers<[1], [0], [0], [1], [0, 0, 1, 1], [], []>} : vector<2x32xbf16>, vector<32x128xbf16>, vector<2x128xf32> -> vector<2x128xf32>
    %61 = arith.addf %58, %60 : vector<2x128xf32>
    %62 = arith.negf %61 : vector<2x128xf32>
    %63 = math.exp %62 : vector<2x128xf32>
    %cst_28 = arith.constant 1.000000e+00 : f32
    %64 = vector.broadcast %cst_28 : f32 to vector<2x128xf32>
    %65 = arith.addf %64, %63 : vector<2x128xf32>
    %66 = arith.divf %64, %65 : vector<2x128xf32>
    %67 = math.tanh %61 : vector<2x128xf32>
    %68 = vector.extract_strided_slice %66 {offsets = [0, 0], sizes = [2, 32], strides = [1, 1]} : vector<2x128xf32> to vector<2x32xf32>
    %69 = vector.extract_strided_slice %66 {offsets = [0, 32], sizes = [2, 32], strides = [1, 1]} : vector<2x128xf32> to vector<2x32xf32>
    %70 = vector.extract_strided_slice %67 {offsets = [0, 64], sizes = [2, 32], strides = [1, 1]} : vector<2x128xf32> to vector<2x32xf32>
    %71 = vector.extract_strided_slice %66 {offsets = [0, 96], sizes = [2, 32], strides = [1, 1]} : vector<2x128xf32> to vector<2x32xf32>
    %72 = arith.mulf %69, %57 : vector<2x32xf32>
    %73 = arith.mulf %68, %70 : vector<2x32xf32>
    %74 = arith.addf %72, %73 : vector<2x32xf32>
    %75 = math.tanh %74 : vector<2x32xf32>
    %76 = arith.mulf %71, %75 : vector<2x32xf32>
    %77 = arith.truncf %76 : vector<2x32xf32> to vector<2x32xbf16>
    %cst_29 = arith.constant dense<0.000000e+00> : vector<2x128xf32>
    %78 = tpu.matmul %77, %16, %cst_29 {dimension_numbers = #tpu.dot_dimension_numbers<[1], [0], [0], [1], [0, 0, 1, 1], [], []>} : vector<2x32xbf16>, vector<32x128xbf16>, vector<2x128xf32> -> vector<2x128xf32>
    %79 = vector.broadcast %2 : vector<1x128xf32> to vector<2x128xf32>
    %80 = arith.addf %78, %79 : vector<2x128xf32>
    %c2_30 = arith.constant 2 : index
    %c0_31 = arith.constant 0 : index
    %81 = vector.load %arg10[%c2_30, %c0_31] : memref<8x128xf32, #tpu.memory_space<vmem>>, vector<2x128xf32>
    tpu.vector_store %arg10[%c2_30, %c0_31], %80 {strides = array<i32>} : memref<8x128xf32, #tpu.memory_space<vmem>>, vector<2x128xf32>,
    %82 = vector.extract_strided_slice %17 {offsets = [4, 0], sizes = [2, 1], strides = [1, 1]} : vector<8x1xf32> to vector<2x1xf32>
    %cst_32 = arith.constant 1.000000e+00 : f32
    %83 = vector.broadcast %cst_32 : f32 to vector<2x1xf32>
    %84 = arith.subf %83, %82 : vector<2x1xf32>
    %85 = vector.broadcast %84 : vector<2x1xf32> to vector<2x32xf32>
    %86 = arith.mulf %76, %85 : vector<2x32xf32>
    %87 = vector.broadcast %84 : vector<2x1xf32> to vector<2x32xf32>
    %88 = arith.mulf %74, %87 : vector<2x32xf32>
    %89 = vector.extract_strided_slice %14 {offsets = [4, 0], sizes = [2, 128], strides = [1, 1]} : vector<8x128xf32> to vector<2x128xf32>
    %90 = arith.truncf %86 : vector<2x32xf32> to vector<2x32xbf16>
    %cst_33 = arith.constant dense<0.000000e+00> : vector<2x128xf32>
    %91 = tpu.matmul %90, %15, %cst_33 {dimension_numbers = #tpu.dot_dimension_numbers<[1], [0], [0], [1], [0, 0, 1, 1], [], []>} : vector<2x32xbf16>, vector<32x128xbf16>, vector<2x128xf32> -> vector<2x128xf32>
    %92 = arith.addf %89, %91 : vector<2x128xf32>
    %93 = arith.negf %92 : vector<2x128xf32>
    %94 = math.exp %93 : vector<2x128xf32>
    %cst_34 = arith.constant 1.000000e+00 : f32
    %95 = vector.broadcast %cst_34 : f32 to vector<2x128xf32>
    %96 = arith.addf %95, %94 : vector<2x128xf32>
    %97 = arith.divf %95, %96 : vector<2x128xf32>
    %98 = math.tanh %92 : vector<2x128xf32>
    %99 = vector.extract_strided_slice %97 {offsets = [0, 0], sizes = [2, 32], strides = [1, 1]} : vector<2x128xf32> to vector<2x32xf32>
    %100 = vector.extract_strided_slice %97 {offsets = [0, 32], sizes = [2, 32], strides = [1, 1]} : vector<2x128xf32> to vector<2x32xf32>
    %101 = vector.extract_strided_slice %98 {offsets = [0, 64], sizes = [2, 32], strides = [1, 1]} : vector<2x128xf32> to vector<2x32xf32>
    %102 = vector.extract_strided_slice %97 {offsets = [0, 96], sizes = [2, 32], strides = [1, 1]} : vector<2x128xf32> to vector<2x32xf32>
    %103 = arith.mulf %100, %88 : vector<2x32xf32>
    %104 = arith.mulf %99, %101 : vector<2x32xf32>
    %105 = arith.addf %103, %104 : vector<2x32xf32>
    %106 = math.tanh %105 : vector<2x32xf32>
    %107 = arith.mulf %102, %106 : vector<2x32xf32>
    %108 = arith.truncf %107 : vector<2x32xf32> to vector<2x32xbf16>
    %cst_35 = arith.constant dense<0.000000e+00> : vector<2x128xf32>
    %109 = tpu.matmul %108, %16, %cst_35 {dimension_numbers = #tpu.dot_dimension_numbers<[1], [0], [0], [1], [0, 0, 1, 1], [], []>} : vector<2x32xbf16>, vector<32x128xbf16>, vector<2x128xf32> -> vector<2x128xf32>
    %110 = vector.broadcast %2 : vector<1x128xf32> to vector<2x128xf32>
    %111 = arith.addf %109, %110 : vector<2x128xf32>
    %c4 = arith.constant 4 : index
    %c0_36 = arith.constant 0 : index
    %112 = vector.load %arg10[%c4, %c0_36] : memref<8x128xf32, #tpu.memory_space<vmem>>, vector<2x128xf32>
    tpu.vector_store %arg10[%c4, %c0_36], %111 {strides = array<i32>} : memref<8x128xf32, #tpu.memory_space<vmem>>, vector<2x128xf32>,
    %113 = vector.extract_strided_slice %17 {offsets = [6, 0], sizes = [2, 1], strides = [1, 1]} : vector<8x1xf32> to vector<2x1xf32>
    %cst_37 = arith.constant 1.000000e+00 : f32
    %114 = vector.broadcast %cst_37 : f32 to vector<2x1xf32>
    %115 = arith.subf %114, %113 : vector<2x1xf32>
    %116 = vector.broadcast %115 : vector<2x1xf32> to vector<2x32xf32>
    %117 = arith.mulf %107, %116 : vector<2x32xf32>
    %118 = vector.broadcast %115 : vector<2x1xf32> to vector<2x32xf32>
    %119 = arith.mulf %105, %118 : vector<2x32xf32>
    %120 = vector.extract_strided_slice %14 {offsets = [6, 0], sizes = [2, 128], strides = [1, 1]} : vector<8x128xf32> to vector<2x128xf32>
    %121 = arith.truncf %117 : vector<2x32xf32> to vector<2x32xbf16>
    %cst_38 = arith.constant dense<0.000000e+00> : vector<2x128xf32>
    %122 = tpu.matmul %121, %15, %cst_38 {dimension_numbers = #tpu.dot_dimension_numbers<[1], [0], [0], [1], [0, 0, 1, 1], [], []>} : vector<2x32xbf16>, vector<32x128xbf16>, vector<2x128xf32> -> vector<2x128xf32>
    %123 = arith.addf %120, %122 : vector<2x128xf32>
    %124 = arith.negf %123 : vector<2x128xf32>
    %125 = math.exp %124 : vector<2x128xf32>
    %cst_39 = arith.constant 1.000000e+00 : f32
    %126 = vector.broadcast %cst_39 : f32 to vector<2x128xf32>
    %127 = arith.addf %126, %125 : vector<2x128xf32>
    %128 = arith.divf %126, %127 : vector<2x128xf32>
    %129 = math.tanh %123 : vector<2x128xf32>
    %130 = vector.extract_strided_slice %128 {offsets = [0, 0], sizes = [2, 32], strides = [1, 1]} : vector<2x128xf32> to vector<2x32xf32>
    %131 = vector.extract_strided_slice %128 {offsets = [0, 32], sizes = [2, 32], strides = [1, 1]} : vector<2x128xf32> to vector<2x32xf32>
    %132 = vector.extract_strided_slice %129 {offsets = [0, 64], sizes = [2, 32], strides = [1, 1]} : vector<2x128xf32> to vector<2x32xf32>
    %133 = vector.extract_strided_slice %128 {offsets = [0, 96], sizes = [2, 32], strides = [1, 1]} : vector<2x128xf32> to vector<2x32xf32>
    %134 = arith.mulf %131, %119 : vector<2x32xf32>
    %135 = arith.mulf %130, %132 : vector<2x32xf32>
    %136 = arith.addf %134, %135 : vector<2x32xf32>
    %137 = math.tanh %136 : vector<2x32xf32>
    %138 = arith.mulf %133, %137 : vector<2x32xf32>
    %139 = arith.truncf %138 : vector<2x32xf32> to vector<2x32xbf16>
    %cst_40 = arith.constant dense<0.000000e+00> : vector<2x128xf32>
    %140 = tpu.matmul %139, %16, %cst_40 {dimension_numbers = #tpu.dot_dimension_numbers<[1], [0], [0], [1], [0, 0, 1, 1], [], []>} : vector<2x32xbf16>, vector<32x128xbf16>, vector<2x128xf32> -> vector<2x128xf32>
    %141 = vector.broadcast %2 : vector<1x128xf32> to vector<2x128xf32>
    %142 = arith.addf %140, %141 : vector<2x128xf32>
    %c6 = arith.constant 6 : index
    %c0_41 = arith.constant 0 : index
    %143 = vector.load %arg10[%c6, %c0_41] : memref<8x128xf32, #tpu.memory_space<vmem>>, vector<2x128xf32>
    tpu.vector_store %arg10[%c6, %c0_41], %142 {strides = array<i32>} : memref<8x128xf32, #tpu.memory_space<vmem>>, vector<2x128xf32>,
    %c0_42 = arith.constant 0 : index
    %c0_43 = arith.constant 0 : index
    %144 = vector.load %arg10[%c0_42, %c0_43] : memref<8x128xf32, #tpu.memory_space<vmem>>, vector<8x128xf32>
    %145 = vector.extract_strided_slice %144 {offsets = [0, 0], sizes = [8, 1], strides = [1, 1]} : vector<8x128xf32> to vector<8x1xf32>
    %c0_44 = arith.constant 0 : index
    %c0_45 = arith.constant 0 : index
    %146 = vector.load %arg2[%c0_44, %c0_45] : memref<8x3xi32, #tpu.memory_space<vmem>>, vector<8x3xi32>
    %147 = tpu.iota {dimensions = array<i32: 1>} : vector<8x8xi32>
    %cst_46 = arith.constant 0.000000e+00 : f32
    %148 = vector.broadcast %cst_46 : f32 to vector<8x1xf32>
    %cst_47 = arith.constant 0.000000e+00 : f32
    %149 = vector.broadcast %cst_47 : f32 to vector<8x1xf32>
    %150 = vector.extract_strided_slice %144 {offsets = [0, 1], sizes = [8, 8], strides = [1, 1]} : vector<8x128xf32> to vector<8x8xf32>
    %cst_48 = arith.constant dense<0xFF800000> : vector<8xf32>
    %151 = vector.multi_reduction <maximumf>, %150, %cst_48 [1] : vector<8x8xf32> to vector<8xf32>
    %152 = vector.shape_cast %151 : vector<8xf32> to vector<8x1xf32>
    %153 = vector.broadcast %152 : vector<8x1xf32> to vector<8x8xf32>
    %154 = arith.subf %150, %153 : vector<8x8xf32>
    %155 = math.exp %154 : vector<8x8xf32>
    %cst_49 = arith.constant dense<0.000000e+00> : vector<8xf32>
    %156 = vector.multi_reduction <add>, %155, %cst_49 [1] : vector<8x8xf32> to vector<8xf32>
    %157 = vector.shape_cast %156 : vector<8xf32> to vector<8x1xf32>
    %158 = math.log %157 : vector<8x1xf32>
    %159 = vector.broadcast %158 : vector<8x1xf32> to vector<8x8xf32>
    %160 = arith.subf %154, %159 : vector<8x8xf32>
    %161 = tpu.reciprocal %157 {approx = true} : vector<8x1xf32> -> vector<8x1xf32>
    %162 = vector.broadcast %161 : vector<8x1xf32> to vector<8x8xf32>
    %163 = arith.mulf %155, %162 : vector<8x8xf32>
    %164 = vector.extract_strided_slice %146 {offsets = [0, 0], sizes = [8, 1], strides = [1, 1]} : vector<8x3xi32> to vector<8x1xi32>
    %165 = vector.broadcast %164 : vector<8x1xi32> to vector<8x8xi32>
    %166 = arith.cmpi eq, %147, %165 : vector<8x8xi32>
    %167 = arith.extui %166 : vector<8x8xi1> to vector<8x8xi32>
    %168 = arith.sitofp %167 : vector<8x8xi32> to vector<8x8xf32>
    %169 = arith.mulf %168, %160 : vector<8x8xf32>
    %cst_50 = arith.constant dense<0.000000e+00> : vector<8xf32>
    %170 = vector.multi_reduction <add>, %169, %cst_50 [1] : vector<8x8xf32> to vector<8xf32>
    %171 = vector.shape_cast %170 : vector<8xf32> to vector<8x1xf32>
    %172 = arith.addf %148, %171 : vector<8x1xf32>
    %173 = arith.mulf %163, %160 : vector<8x8xf32>
    %cst_51 = arith.constant dense<0.000000e+00> : vector<8xf32>
    %174 = vector.multi_reduction <add>, %173, %cst_51 [1] : vector<8x8xf32> to vector<8xf32>
    %175 = vector.shape_cast %174 : vector<8xf32> to vector<8x1xf32>
    %176 = arith.subf %149, %175 : vector<8x1xf32>
    %177 = vector.extract_strided_slice %144 {offsets = [0, 9], sizes = [8, 8], strides = [1, 1]} : vector<8x128xf32> to vector<8x8xf32>
    %cst_52 = arith.constant dense<0xFF800000> : vector<8xf32>
    %178 = vector.multi_reduction <maximumf>, %177, %cst_52 [1] : vector<8x8xf32> to vector<8xf32>
    %179 = vector.shape_cast %178 : vector<8xf32> to vector<8x1xf32>
    %180 = vector.broadcast %179 : vector<8x1xf32> to vector<8x8xf32>
    %181 = arith.subf %177, %180 : vector<8x8xf32>
    %182 = math.exp %181 : vector<8x8xf32>
    %cst_53 = arith.constant dense<0.000000e+00> : vector<8xf32>
    %183 = vector.multi_reduction <add>, %182, %cst_53 [1] : vector<8x8xf32> to vector<8xf32>
    %184 = vector.shape_cast %183 : vector<8xf32> to vector<8x1xf32>
    %185 = math.log %184 : vector<8x1xf32>
    %186 = vector.broadcast %185 : vector<8x1xf32> to vector<8x8xf32>
    %187 = arith.subf %181, %186 : vector<8x8xf32>
    %188 = tpu.reciprocal %184 {approx = true} : vector<8x1xf32> -> vector<8x1xf32>
    %189 = vector.broadcast %188 : vector<8x1xf32> to vector<8x8xf32>
    %190 = arith.mulf %182, %189 : vector<8x8xf32>
    %191 = vector.extract_strided_slice %146 {offsets = [0, 1], sizes = [8, 1], strides = [1, 1]} : vector<8x3xi32> to vector<8x1xi32>
    %192 = vector.broadcast %191 : vector<8x1xi32> to vector<8x8xi32>
    %193 = arith.cmpi eq, %147, %192 : vector<8x8xi32>
    %194 = arith.extui %193 : vector<8x8xi1> to vector<8x8xi32>
    %195 = arith.sitofp %194 : vector<8x8xi32> to vector<8x8xf32>
    %196 = arith.mulf %195, %187 : vector<8x8xf32>
    %cst_54 = arith.constant dense<0.000000e+00> : vector<8xf32>
    %197 = vector.multi_reduction <add>, %196, %cst_54 [1] : vector<8x8xf32> to vector<8xf32>
    %198 = vector.shape_cast %197 : vector<8xf32> to vector<8x1xf32>
    %199 = arith.addf %172, %198 : vector<8x1xf32>
    %200 = arith.mulf %190, %187 : vector<8x8xf32>
    %cst_55 = arith.constant dense<0.000000e+00> : vector<8xf32>
    %201 = vector.multi_reduction <add>, %200, %cst_55 [1] : vector<8x8xf32> to vector<8xf32>
    %202 = vector.shape_cast %201 : vector<8xf32> to vector<8x1xf32>
    %203 = arith.subf %176, %202 : vector<8x1xf32>
    %204 = vector.extract_strided_slice %144 {offsets = [0, 17], sizes = [8, 8], strides = [1, 1]} : vector<8x128xf32> to vector<8x8xf32>
    %cst_56 = arith.constant dense<0xFF800000> : vector<8xf32>
    %205 = vector.multi_reduction <maximumf>, %204, %cst_56 [1] : vector<8x8xf32> to vector<8xf32>
    %206 = vector.shape_cast %205 : vector<8xf32> to vector<8x1xf32>
    %207 = vector.broadcast %206 : vector<8x1xf32> to vector<8x8xf32>
    %208 = arith.subf %204, %207 : vector<8x8xf32>
    %209 = math.exp %208 : vector<8x8xf32>
    %cst_57 = arith.constant dense<0.000000e+00> : vector<8xf32>
    %210 = vector.multi_reduction <add>, %209, %cst_57 [1] : vector<8x8xf32> to vector<8xf32>
    %211 = vector.shape_cast %210 : vector<8xf32> to vector<8x1xf32>
    %212 = math.log %211 : vector<8x1xf32>
    %213 = vector.broadcast %212 : vector<8x1xf32> to vector<8x8xf32>
    %214 = arith.subf %208, %213 : vector<8x8xf32>
    %215 = tpu.reciprocal %211 {approx = true} : vector<8x1xf32> -> vector<8x1xf32>
    %216 = vector.broadcast %215 : vector<8x1xf32> to vector<8x8xf32>
    %217 = arith.mulf %209, %216 : vector<8x8xf32>
    %218 = vector.extract_strided_slice %146 {offsets = [0, 2], sizes = [8, 1], strides = [1, 1]} : vector<8x3xi32> to vector<8x1xi32>
    %219 = vector.broadcast %218 : vector<8x1xi32> to vector<8x8xi32>
    %220 = arith.cmpi eq, %147, %219 : vector<8x8xi32>
    %221 = arith.extui %220 : vector<8x8xi1> to vector<8x8xi32>
    %222 = arith.sitofp %221 : vector<8x8xi32> to vector<8x8xf32>
    %223 = arith.mulf %222, %214 : vector<8x8xf32>
    %cst_58 = arith.constant dense<0.000000e+00> : vector<8xf32>
    %224 = vector.multi_reduction <add>, %223, %cst_58 [1] : vector<8x8xf32> to vector<8xf32>
    %225 = vector.shape_cast %224 : vector<8xf32> to vector<8x1xf32>
    %226 = arith.addf %199, %225 : vector<8x1xf32>
    %227 = arith.mulf %217, %214 : vector<8x8xf32>
    %cst_59 = arith.constant dense<0.000000e+00> : vector<8xf32>
    %228 = vector.multi_reduction <add>, %227, %cst_59 [1] : vector<8x8xf32> to vector<8xf32>
    %229 = vector.shape_cast %228 : vector<8xf32> to vector<8x1xf32>
    %230 = arith.subf %203, %229 : vector<8x1xf32>
    %cst_60 = arith.constant 0.000000e+00 : f32
    %231 = vector.broadcast %cst_60 : f32 to vector<8x125xf32>
    %232 = tpu.concatenate %145, %226, %230, %231 in 1 : vector<8x1xf32>, vector<8x1xf32>, vector<8x1xf32>, vector<8x125xf32> -> vector<8x128xf32>
    %c0_61 = arith.constant 0 : index
    %c0_62 = arith.constant 0 : index
    %233 = vector.load %arg9[%c0_61, %c0_62] : memref<12x128xf32, #tpu.memory_space<vmem>>, vector<8x128xf32>
    tpu.vector_store %arg9[%c0_61, %c0_62], %232 {strides = array<i32>} : memref<12x128xf32, #tpu.memory_space<vmem>>, vector<8x128xf32>,
    %cst_63 = arith.constant 0.000000e+00 : f32
    %234 = vector.broadcast %cst_63 : f32 to vector<2x96xf32>
    %235 = tpu.concatenate %138, %234 in 1 : vector<2x32xf32>, vector<2x96xf32> -> vector<2x128xf32>
    %c8 = arith.constant 8 : index
    %c0_64 = arith.constant 0 : index
    %236 = vector.load %arg9[%c8, %c0_64] : memref<12x128xf32, #tpu.memory_space<vmem>>, vector<2x128xf32>
    tpu.vector_store %arg9[%c8, %c0_64], %235 {strides = array<i32>} : memref<12x128xf32, #tpu.memory_space<vmem>>, vector<2x128xf32>,
    %237 = tpu.concatenate %136, %234 in 1 : vector<2x32xf32>, vector<2x96xf32> -> vector<2x128xf32>
    %c10 = arith.constant 10 : index
    %c0_65 = arith.constant 0 : index
    %238 = vector.load %arg9[%c10, %c0_65] : memref<12x128xf32, #tpu.memory_space<vmem>>, vector<2x128xf32>
    tpu.vector_store %arg9[%c10, %c0_65], %237 {strides = array<i32>} : memref<12x128xf32, #tpu.memory_space<vmem>>, vector<2x128xf32>,
    return
  }
}

</mosaic_0001>

<llo_original>
// kernel: agent_forward.1
$region0: #{agent_forward.1}
  #allocation0 [shape = 'u32[]', space=smem, size = 0x4, offset = 0x4, fixed_abs, tag = 'smem constant byte address 0x4 - core index']
  #allocation1 [shape = 'u32[72,128]{1,0:T(1,128)}', space=vmem, size = 0x9000, scoped, tag = 'internal scratch']
  #allocation2 [shape = 'f32[8,128]{1,0:T(8,128)}', space=vmem, size = 0x1000, scoped, tag = 'scratch operand']
  %s0 = inlined_call_operand.vmem [shape: f32[8,64], index: 0, kind: input, shape index: {}]
  %s1 = inlined_call_operand.vmem [shape: f32[8,1], index: 1, kind: input, shape index: {}]
  %s2 = inlined_call_operand.vmem [shape: s32[8,3], index: 2, kind: input, shape index: {}]
  %s3 = inlined_call_operand.vmem [shape: f32[4,32], index: 3, kind: input, shape index: {}]
  %s4 = inlined_call_operand.vmem [shape: bf16[64,32], index: 4, kind: input, shape index: {}]
  %s5 = inlined_call_operand.vmem [shape: bf16[32,128], index: 5, kind: input, shape index: {}]
  %s6 = inlined_call_operand.vmem [shape: bf16[32,128], index: 6, kind: input, shape index: {}]
  %s7 = inlined_call_operand.vmem [shape: bf16[32,128], index: 7, kind: input, shape index: {}]
  %s8 = inlined_call_operand.vmem [shape: f32[3,128], index: 8, kind: input, shape index: {}]
  %s9 = inlined_call_operand.vmem [shape: f32[12,128], index: 9, kind: output, shape index: {}]
  %s10 = sld [smem:[#allocation0]]
  $region46: #{agent_forward.1} parent=0
    _
  %s12 = ssub.s32 1, %s10
  %s13 = scalar_select 0, %s12, %s10
  // Predicated region
  $region2: #{agent_forward.1} parent=0 // pred_check
    _
  $region3: #{agent_forward.1} parent=0 // pred_check_branch
    %15 = sbr.rel (0) target = $region5
  $region4: #{agent_forward.1} parent=0 // pred_region
    _
  $region5: #{agent_forward.1} parent=0 // pred_fallthru
    _
  // Predicated region
  $region6: #{agent_forward.1} parent=0 // pred_check
    _
  $region7: #{agent_forward.1} parent=0 // pred_check_branch
    %17 = sbr.rel (0) target = $region9
  $region8: #{agent_forward.1} parent=0 // pred_region
    _
  $region9: #{agent_forward.1} parent=0 // pred_fallthru
    _
  // Predicated region
  $region10: #{agent_forward.1} parent=0 // pred_check
    _
  $region11: #{agent_forward.1} parent=0 // pred_check_branch
    %19 = sbr.rel (0) target = $region13
  $region12: #{agent_forward.1} parent=0 // pred_region
    _
  $region13: #{agent_forward.1} parent=0 // pred_fallthru
    _
  // Predicated region
  $region14: #{agent_forward.1} parent=0 // pred_check
    _
  $region15: #{agent_forward.1} parent=0 // pred_check_branch
    %21 = sbr.rel (0) target = $region17
  $region16: #{agent_forward.1} parent=0 // pred_region
    _
  $region17: #{agent_forward.1} parent=0 // pred_fallthru
    _
  // Predicated region
  $region18: #{agent_forward.1} parent=0 // pred_check
    _
  $region19: #{agent_forward.1} parent=0 // pred_check_branch
    %23 = sbr.rel (0) target = $region21
  $region20: #{agent_forward.1} parent=0 // pred_region
    _
  $region21: #{agent_forward.1} parent=0 // pred_fallthru
    _
  // Predicated region
  $region22: #{agent_forward.1} parent=0 // pred_check
    _
  $region23: #{agent_forward.1} parent=0 // pred_check_branch
    %25 = sbr.rel (0) target = $region25
  $region24: #{agent_forward.1} parent=0 // pred_region
    _
  $region25: #{agent_forward.1} parent=0 // pred_fallthru
    _
  // Predicated region
  $region26: #{agent_forward.1} parent=0 // pred_check
    _
  $region27: #{agent_forward.1} parent=0 // pred_check_branch
    %27 = sbr.rel (0) target = $region29
  $region28: #{agent_forward.1} parent=0 // pred_region
    _
  $region29: #{agent_forward.1} parent=0 // pred_fallthru
    _
  // Predicated region
  $region30: #{agent_forward.1} parent=0 // pred_check
    _
  $region31: #{agent_forward.1} parent=0 // pred_check_branch
    %29 = sbr.rel (0) target = $region33
  $region32: #{agent_forward.1} parent=0 // pred_region
    _
  $region33: #{agent_forward.1} parent=0 // pred_fallthru
    _
  // Predicated region
  $region34: #{agent_forward.1} parent=0 // pred_check
    _
  $region35: #{agent_forward.1} parent=0 // pred_check_branch
    %31 = sbr.rel (0) target = $region37
  $region36: #{agent_forward.1} parent=0 // pred_region
    _
  $region37: #{agent_forward.1} parent=0 // pred_fallthru
    _
  %v33 = vld [vmem:[%s8] sm:$0x1]
  %v34 = vld [vmem:[%s8 + $0x1] sm:$0x1]
  %v35 = vld [vmem:[%s8 + $0x2] sm:$0x1]
  %v36 = vld [vmem:[%s0] sm:$0xff]
  %v37 = vpack.c.bf16 %v36, %v36
  %v38 = vld [vmem:[%s4] sm:$0xf]
  %v39 = vld [vmem:[%s4 + $0x4] sm:$0xf]
  %v40 = vld [vmem:[%s4 + $0x8] sm:$0xf]
  %v41 = vld [vmem:[%s4 + $0xc] sm:$0xf]
  %v42 = vld [vmem:[%s4 + $0x10] sm:$0xf]
  %v43 = vld [vmem:[%s4 + $0x14] sm:$0xf]
  %v44 = vld [vmem:[%s4 + $0x18] sm:$0xf]
  %v45 = vld [vmem:[%s4 + $0x1c] sm:$0xf]
  %v46 = vperm.slane %v33, 0
  %v55 = vunpack.c.l.b16 %v38
  %v56 = vunpack.c.l.b16 %v39
  %v57 = vunpack.c.l.b16 %v40
  %v58 = vunpack.c.l.b16 %v41
  %v59 = vunpack.c.l.b16 %v42
  %v60 = vunpack.c.l.b16 %v43
  %v61 = vunpack.c.l.b16 %v44
  %v62 = vunpack.c.l.b16 %v45
  %v63 = vpack.c.b16 %v56, %v55
  %v64 = vpack.c.b16 %v58, %v57
  %v65 = vpack.c.b16 %v60, %v59
  %v66 = vpack.c.b16 %v62, %v61
  %vm71 = vcmask 523264
  %v73 = vsel %vm71, %v37, 0
  %75 = vmatpush.bf16.msra.mxu0 0
  %76 = vmatpush.bf16.msra.mxu0 0
  %77 = vmatpush.bf16.msra.mxu0 0
  %78 = vmatpush.bf16.msra.mxu0 0
  %79 = vmatpush.bf16.msra.mxu0 %v66
  %80 = vmatpush.bf16.msra.mxu0 %v65
  %81 = vmatpush.bf16.msra.mxu0 %v64
  %82 = vmatpush.bf16.msra.mxu0 %v63
  %83 = vmatmul.bf16.gmra.mxu0 %v73
  %v84 = vpop.f32.mrf.mxu0
  %v85 = vadd.f32 %v46, %v84
  %v86 = vpop.f32.mrf.mxu0
  %87 = vdwg.mxu0
  %v88 = vtanh.pop %v85
  %v89 = vpack.c.bf16 %v88, %v88
  %v90 = vld [vmem:[%s5] sm:$0xf]
  %v91 = vld [vmem:[%s5 + $0x4] sm:$0xf]
  %v92 = vld [vmem:[%s5 + $0x8] sm:$0xf]
  %v93 = vld [vmem:[%s5 + $0xc] sm:$0xf]
  %v94 = vperm.slane %v34, 0
  %v99 = vunpack.c.l.b16 %v90
  %v100 = vunpack.c.l.b16 %v91
  %v101 = vunpack.c.l.b16 %v92
  %v102 = vunpack.c.l.b16 %v93
  %v103 = vpack.c.b16 %v100, %v99
  %v104 = vpack.c.b16 %v102, %v101
  %vm107 = vcmask 261120
  %v109 = vsel %vm107, %v89, 0
  %111 = vmatpush.bf16.msra.mxu0 0
  %112 = vmatpush.bf16.msra.mxu0 0
  %113 = vmatpush.bf16.msra.mxu0 0
  %114 = vmatpush.bf16.msra.mxu0 0
  %115 = vmatpush.bf16.msra.mxu0 0
  %116 = vmatpush.bf16.msra.mxu0 0
  %117 = vmatpush.bf16.msra.mxu0 %v104
  %118 = vmatpush.bf16.msra.mxu0 %v103
  %119 = vmatmul.bf16.gmra.mxu0 %v109
  %v120 = vpop.f32.mrf.mxu0
  %v121 = vadd.f32 %v94, %v120
  %v122 = vpop.f32.mrf.mxu0
  %123 = vdwg.mxu0
  %v124 = vld [vmem:[%s6] sm:$0xf]
  %v125 = vld [vmem:[%s6 + $0x4] sm:$0xf]
  %v126 = vld [vmem:[%s6 + $0x8] sm:$0xf]
  %v127 = vld [vmem:[%s6 + $0xc] sm:$0xf]
  %v128 = vld [vmem:[%s7] sm:$0xf]
  %v129 = vld [vmem:[%s7 + $0x4] sm:$0xf]
  %v130 = vld [vmem:[%s7 + $0x8] sm:$0xf]
  %v131 = vld [vmem:[%s7 + $0xc] sm:$0xf]
  %v132 = vld [vmem:[%s1] sm:$0xff]
  %v133 = vld [vmem:[%s3] sm:$0x3]
  %v134 = vld [vmem:[%s3 + $0x2] sm:$0x3]
  %v135 = vsub.f32 1.0, %v132
  %137 = vset.pattern.permute.xlu0 0
  %138 = vperm.xlu0 %137, %v135
  %v139 = vpop.permute.xlu0 %138
  %v141 = vmul.f32 %v133, %v139
  %v142 = vmul.f32 %v134, %v139
  %v143 = vpack.c.bf16 %v141, %v141
  %v148 = vunpack.c.l.b16 %v124
  %v149 = vunpack.c.l.b16 %v125
  %v150 = vunpack.c.l.b16 %v126
  %v151 = vunpack.c.l.b16 %v127
  %v152 = vpack.c.b16 %v149, %v148
  %v153 = vpack.c.b16 %v151, %v150
  %v157 = vsel %vm107, %v143, 0
  %159 = vmatpush.bf16.msra.mxu0 0
  %160 = vmatpush.bf16.msra.mxu0 0
  %161 = vmatpush.bf16.msra.mxu0 0
  %162 = vmatpush.bf16.msra.mxu0 0
  %163 = vmatpush.bf16.msra.mxu0 0
  %164 = vmatpush.bf16.msra.mxu0 0
  %165 = vmatpush.bf16.msra.mxu0 %v153
  %166 = vmatpush.bf16.msra.mxu0 %v152
  %167 = vmatmul.bf16.gmra.mxu0 %v157
  %v168 = vpop.f32.mrf.mxu0
  %v169 = vadd.f32 0.0, %v168
  %v170 = vpop.f32.mrf.mxu0
  %171 = vdwg.mxu0
  %v172 = vadd.f32 %v121, %v169
  %v173 = vxor.u32 %v172, 2147483648
  %v174 = vmul.f32 %v173, 1.442695
  %v175 = vpow.pop %v174
  %v176 = vadd.f32 %v175, 1.0
  %v177 = vrcp.pop %v176
  %v178 = vmul.f32 %v176, %v177
  %v179 = vsub.f32 1.0, %v178
  %v180 = vmul.f32 %v177, %v179
  %v181 = vadd.f32 %v177, %v180
  %vm182 = vweird.f32 %v176
  %vm183 = vweird.f32 %v177
  %vm184 = vmor %vm182, %vm183
  %v185 = vsel %vm184, %v177, %v181
  %v186 = vand.u32 2147483647, %v176
  %vm187 = vcmp.eq.f32.partialorder %v186, 8.507059e+37
  %v188 = vand.u32 %v176, 2147483648
  %v189 = vor.u32 1.1754944e-38, %v188
  %v190 = vsel %vm187, %v189, %v185
  %v191 = vmul.f32 1.0, %v190
  %v192 = vtanh.pop %v172
  %194 = vrot.lane.b32.xlu0 %v142, 32
  %v195 = vpop.permute.xlu0 %194
  %v197 = vmul.f32 %v191, %v195
  %199 = vrot.lane.b32.xlu0 %v192, 64
  %v200 = vpop.permute.xlu0 %199
  %v202 = vmul.f32 %v191, %v200
  %204 = vrot.lane.b32.xlu0 %v202, 32
  %v205 = vpop.permute.xlu0 %204
  %v207 = vadd.f32 %v197, %v205
  %v208 = vtanh.pop %v207
  %210 = vrot.lane.b32.xlu0 %v208, 64
  %v211 = vpop.permute.xlu0 %210
  %v213 = vmul.f32 %v191, %v211
  %v214 = vpack.c.bf16 %v213, %v213
  %v215 = vperm.slane %v35, 0
  %217 = vrot.lane.b32.xlu0 %v214, 32
  %v218 = vpop.permute.xlu0 %217
  %v223 = vunpack.c.l.b16 %v128
  %v224 = vunpack.c.l.b16 %v129
  %v225 = vunpack.c.l.b16 %v130
  %v226 = vunpack.c.l.b16 %v131
  %v227 = vpack.c.b16 %v224, %v223
  %v228 = vpack.c.b16 %v226, %v225
  %v232 = vsel %vm107, %v218, 0
  %234 = vmatpush.bf16.msra.mxu0 0
  %235 = vmatpush.bf16.msra.mxu0 0
  %236 = vmatpush.bf16.msra.mxu0 0
  %237 = vmatpush.bf16.msra.mxu0 0
  %238 = vmatpush.bf16.msra.mxu0 0
  %239 = vmatpush.bf16.msra.mxu0 0
  %240 = vmatpush.bf16.msra.mxu0 %v228
  %241 = vmatpush.bf16.msra.mxu0 %v227
  %242 = vmatmul.bf16.gmra.mxu0 %v232
  %v243 = vpop.f32.mrf.mxu0
  %v244 = vadd.f32 %v215, %v243
  %v245 = vpop.f32.mrf.mxu0
  %246 = vdwg.mxu0
  %247 = vst [vmem:[#allocation2] sm:$0x3] %v244
  %v248 = vrot.slane %v139, 2
  %v250 = vmul.f32 %v213, %v248
  %v251 = vmul.f32 %v207, %v248
  %v252 = vpack.c.bf16 %v250, %v250
  %254 = vrot.lane.b32.xlu0 %v252, 32
  %v255 = vpop.permute.xlu0 %254
  %v257 = vsel %vm107, %v255, 0
  %259 = vmatpush.bf16.msra.mxu0 0
  %260 = vmatpush.bf16.msra.mxu0 0
  %261 = vmatpush.bf16.msra.mxu0 0
  %262 = vmatpush.bf16.msra.mxu0 0
  %263 = vmatpush.bf16.msra.mxu0 0
  %264 = vmatpush.bf16.msra.mxu0 0
  %265 = vmatpush.bf16.msra.mxu0 %v153
  %266 = vmatpush.bf16.msra.mxu0 %v152
  %267 = vmatmul.bf16.gmra.mxu0 %v257
  %v268 = vpop.f32.mrf.mxu0
  %v269 = vadd.f32 0.0, %v268
  %v270 = vpop.f32.mrf.mxu0
  %271 = vdwg.mxu0
  %v273 = vrot.slane %v269, 6
  %v275 = vadd.f32 %v121, %v273
  %v276 = vxor.u32 %v275, 2147483648
  %v277 = vmul.f32 %v276, 1.442695
  %v278 = vpow.pop %v277
  %v279 = vadd.f32 %v278, 1.0
  %v280 = vrcp.pop %v279
  %v281 = vmul.f32 %v279, %v280
  %v282 = vsub.f32 1.0, %v281
  %v283 = vmul.f32 %v280, %v282
  %v284 = vadd.f32 %v280, %v283
  %vm285 = vweird.f32 %v279
  %vm286 = vweird.f32 %v280
  %vm287 = vmor %vm285, %vm286
  %v288 = vsel %vm287, %v280, %v284
  %v289 = vand.u32 2147483647, %v279
  %vm290 = vcmp.eq.f32.partialorder %v289, 8.507059e+37
  %v291 = vand.u32 %v279, 2147483648
  %v292 = vor.u32 1.1754944e-38, %v291
  %v293 = vsel %vm290, %v292, %v288
  %v294 = vmul.f32 1.0, %v293
  %v295 = vtanh.pop %v275
  %v297 = vrot.slane %v251, 6
  %v299 = vmul.f32 %v294, %v297
  %301 = vrot.lane.b32.xlu0 %v295, 64
  %v302 = vpop.permute.xlu0 %301
  %v304 = vmul.f32 %v294, %v302
  %306 = vrot.lane.b32.xlu0 %v304, 32
  %v307 = vpop.permute.xlu0 %306
  %v309 = vadd.f32 %v299, %v307
  %v310 = vtanh.pop %v309
  %312 = vrot.lane.b32.xlu0 %v310, 64
  %v313 = vpop.permute.xlu0 %312
  %v315 = vmul.f32 %v294, %v313
  %v316 = vpack.c.bf16 %v315, %v315
  %v318 = vrot.slane %v316, 1
  %319 = vrot.lane.b32.xlu0 %v318, 32
  %v320 = vpop.permute.xlu0 %319
  %v322 = vsel %vm107, %v320, 0
  %324 = vmatpush.bf16.msra.mxu0 0
  %325 = vmatpush.bf16.msra.mxu0 0
  %326 = vmatpush.bf16.msra.mxu0 0
  %327 = vmatpush.bf16.msra.mxu0 0
  %328 = vmatpush.bf16.msra.mxu0 0
  %329 = vmatpush.bf16.msra.mxu0 0
  %330 = vmatpush.bf16.msra.mxu0 %v228
  %331 = vmatpush.bf16.msra.mxu0 %v227
  %332 = vmatmul.bf16.gmra.mxu0 %v322
  %v333 = vpop.f32.mrf.mxu0
  %v334 = vadd.f32 %v215, %v333
  %v335 = vpop.f32.mrf.mxu0
  %336 = vdwg.mxu0
  %337 = vst [vmem:[#allocation2 + $0x2] sm:$0x3] %v334
  %v338 = vmul.f32 %v315, %v248
  %v339 = vmul.f32 %v309, %v248
  %v340 = vpack.c.bf16 %v338, %v338
  %v342 = vrot.slane %v340, 1
  %343 = vrot.lane.b32.xlu0 %v342, 32
  %v344 = vpop.permute.xlu0 %343
  %v346 = vsel %vm107, %v344, 0
  %348 = vmatpush.bf16.msra.mxu0 0
  %349 = vmatpush.bf16.msra.mxu0 0
  %350 = vmatpush.bf16.msra.mxu0 0
  %351 = vmatpush.bf16.msra.mxu0 0
  %352 = vmatpush.bf16.msra.mxu0 0
  %353 = vmatpush.bf16.msra.mxu0 0
  %354 = vmatpush.bf16.msra.mxu0 %v153
  %355 = vmatpush.bf16.msra.mxu0 %v152
  %356 = vmatmul.bf16.gmra.mxu0 %v346
  %v357 = vpop.f32.mrf.mxu0
  %v358 = vadd.f32 0.0, %v357
  %v359 = vpop.f32.mrf.mxu0
  %360 = vdwg.mxu0
  %v362 = vrot.slane %v358, 4
  %v364 = vadd.f32 %v121, %v362
  %v365 = vxor.u32 %v364, 2147483648
  %v366 = vmul.f32 %v365, 1.442695
  %v367 = vpow.pop %v366
  %v368 = vadd.f32 %v367, 1.0
  %v369 = vrcp.pop %v368
  %v370 = vmul.f32 %v368, %v369
  %v371 = vsub.f32 1.0, %v370
  %v372 = vmul.f32 %v369, %v371
  %v373 = vadd.f32 %v369, %v372
  %vm374 = vweird.f32 %v368
  %vm375 = vweird.f32 %v369
  %vm376 = vmor %vm374, %vm375
  %v377 = vsel %vm376, %v369, %v373
  %v378 = vand.u32 2147483647, %v368
  %vm379 = vcmp.eq.f32.partialorder %v378, 8.507059e+37
  %v380 = vand.u32 %v368, 2147483648
  %v381 = vor.u32 1.1754944e-38, %v380
  %v382 = vsel %vm379, %v381, %v377
  %v383 = vmul.f32 1.0, %v382
  %v384 = vtanh.pop %v364
  %v386 = vrot.slane %v339, 6
  %v388 = vmul.f32 %v383, %v386
  %390 = vrot.lane.b32.xlu0 %v384, 64
  %v391 = vpop.permute.xlu0 %390
  %v393 = vmul.f32 %v383, %v391
  %395 = vrot.lane.b32.xlu0 %v393, 32
  %v396 = vpop.permute.xlu0 %395
  %v398 = vadd.f32 %v388, %v396
  %v399 = vtanh.pop %v398
  %401 = vrot.lane.b32.xlu0 %v399, 64
  %v402 = vpop.permute.xlu0 %401
  %v404 = vmul.f32 %v383, %v402
  %v405 = vpack.c.bf16 %v404, %v404
  %v407 = vrot.slane %v405, 2
  %408 = vrot.lane.b32.xlu0 %v407, 32
  %v409 = vpop.permute.xlu0 %408
  %v411 = vsel %vm107, %v409, 0
  %413 = vmatpush.bf16.msra.mxu0 0
  %414 = vmatpush.bf16.msra.mxu0 0
  %415 = vmatpush.bf16.msra.mxu0 0
  %416 = vmatpush.bf16.msra.mxu0 0
  %417 = vmatpush.bf16.msra.mxu0 0
  %418 = vmatpush.bf16.msra.mxu0 0
  %419 = vmatpush.bf16.msra.mxu0 %v228
  %420 = vmatpush.bf16.msra.mxu0 %v227
  %421 = vmatmul.bf16.gmra.mxu0 %v411
  %v422 = vpop.f32.mrf.mxu0
  %v423 = vadd.f32 %v215, %v422
  %v424 = vpop.f32.mrf.mxu0
  %425 = vdwg.mxu0
  %426 = vst [vmem:[#allocation2 + $0x4] sm:$0x3] %v423
  %v427 = vmul.f32 %v404, %v248
  %v428 = vmul.f32 %v398, %v248
  %v429 = vpack.c.bf16 %v427, %v427
  %v431 = vrot.slane %v429, 2
  %432 = vrot.lane.b32.xlu0 %v431, 32
  %v433 = vpop.permute.xlu0 %432
  %v435 = vsel %vm107, %v433, 0
  %437 = vmatpush.bf16.msra.mxu0 0
  %438 = vmatpush.bf16.msra.mxu0 0
  %439 = vmatpush.bf16.msra.mxu0 0
  %440 = vmatpush.bf16.msra.mxu0 0
  %441 = vmatpush.bf16.msra.mxu0 0
  %442 = vmatpush.bf16.msra.mxu0 0
  %443 = vmatpush.bf16.msra.mxu0 %v153
  %444 = vmatpush.bf16.msra.mxu0 %v152
  %445 = vmatmul.bf16.gmra.mxu0 %v435
  %v446 = vpop.f32.mrf.mxu0
  %v447 = vadd.f32 0.0, %v446
  %v448 = vpop.f32.mrf.mxu0
  %449 = vdwg.mxu0
  %v451 = vrot.slane %v447, 2
  %v453 = vadd.f32 %v121, %v451
  %v454 = vxor.u32 %v453, 2147483648
  %v455 = vmul.f32 %v454, 1.442695
  %v456 = vpow.pop %v455
  %v457 = vadd.f32 %v456, 1.0
  %v458 = vrcp.pop %v457
  %v459 = vmul.f32 %v457, %v458
  %v460 = vsub.f32 1.0, %v459
  %v461 = vmul.f32 %v458, %v460
  %v462 = vadd.f32 %v458, %v461
  %vm463 = vweird.f32 %v457
  %vm464 = vweird.f32 %v458
  %vm465 = vmor %vm463, %vm464
  %v466 = vsel %vm465, %v458, %v462
  %v467 = vand.u32 2147483647, %v457
  %vm468 = vcmp.eq.f32.partialorder %v467, 8.507059e+37
  %v469 = vand.u32 %v457, 2147483648
  %v470 = vor.u32 1.1754944e-38, %v469
  %v471 = vsel %vm468, %v470, %v466
  %v472 = vmul.f32 1.0, %v471
  %v473 = vtanh.pop %v453
  %v475 = vrot.slane %v428, 6
  %v477 = vmul.f32 %v472, %v475
  %479 = vrot.lane.b32.xlu0 %v473, 64
  %v480 = vpop.permute.xlu0 %479
  %v482 = vmul.f32 %v472, %v480
  %484 = vrot.lane.b32.xlu0 %v482, 32
  %v485 = vpop.permute.xlu0 %484
  %v487 = vadd.f32 %v477, %v485
  %v488 = vtanh.pop %v487
  %490 = vrot.lane.b32.xlu0 %v488, 64
  %v491 = vpop.permute.xlu0 %490
  %v493 = vmul.f32 %v472, %v491
  %v494 = vpack.c.bf16 %v493, %v493
  %v496 = vrot.slane %v494, 3
  %497 = vrot.lane.b32.xlu0 %v496, 32
  %v498 = vpop.permute.xlu0 %497
  %v500 = vsel %vm107, %v498, 0
  %502 = vmatpush.bf16.msra.mxu0 0
  %503 = vmatpush.bf16.msra.mxu0 0
  %504 = vmatpush.bf16.msra.mxu0 0
  %505 = vmatpush.bf16.msra.mxu0 0
  %506 = vmatpush.bf16.msra.mxu0 0
  %507 = vmatpush.bf16.msra.mxu0 0
  %508 = vmatpush.bf16.msra.mxu0 %v228
  %509 = vmatpush.bf16.msra.mxu0 %v227
  %510 = vmatmul.bf16.gmra.mxu0 %v500
  %v511 = vpop.f32.mrf.mxu0
  %v512 = vadd.f32 %v215, %v511
  %v513 = vpop.f32.mrf.mxu0
  %514 = vdwg.mxu0
  %515 = vst [vmem:[#allocation2 + $0x6] sm:$0x3] %v512
  %v516 = vld [vmem:[#allocation2] sm:$0xff]
  %v517 = vld [vmem:[%s2] sm:$0xff]
  %v518 = vlaneseq
  %v519 = vand.u32 %v518, 127
  %vm520 = vcmask 72712
  %v521 = vsel %vm520, %v516, -inf
  %522 = vmax.xlane.f32.xlu0 %v521
  %v523 = vpop.xlane.xlu0 %522
  %v524 = vsub.f32 %v516, %v523
  %v525 = vmul.f32 %v524, 1.442695
  %v526 = vpow.pop %v525
  %528 = vrot.lane.b32.xlu0 %v526, 127
  %v529 = vpop.permute.xlu0 %528
  %vm531 = vcmask 64512
  %v532 = vsel %vm531, %v529, 0.0
  %533 = vadd.xlane.f32.xlu0 %v532
  %v534 = vpop.xlane.xlu0 %533
  %v535 = vlog2.pop %v534
  %v536 = vmul.f32 %v535, 0.6931472
  %v537 = vsub.f32 %v524, %v536
  %v538 = vrcp.pop %v534
  %v539 = vmul.f32 %v526, %v538
  %540 = vset.pattern.permute.xlu0 0
  %541 = vperm.xlu0 %540, %v517
  %v542 = vpop.permute.xlu0 %541
  %vm543 = vcmp.eq.s32.totalorder %v519, %v542
  %v544 = vsel %vm543, 1, 0
  %v545 = vcvt.s32.f32 %v544
  %547 = vrot.lane.b32.xlu0 %v537, 127
  %v548 = vpop.permute.xlu0 %547
  %v550 = vmul.f32 %v545, %v548
  %v551 = vsel %vm531, %v550, 0.0
  %552 = vadd.xlane.f32.xlu0 %v551
  %v553 = vpop.xlane.xlu0 %552
  %v554 = vadd.f32 %v553, 0.0
  %v555 = vmul.f32 %v539, %v537
  %557 = vrot.lane.b32.xlu0 %v555, 127
  %v558 = vpop.permute.xlu0 %557
  %v560 = vsel %vm531, %v558, 0.0
  %561 = vadd.xlane.f32.xlu0 %v560
  %v562 = vpop.xlane.xlu0 %561
  %v563 = vsub.f32 0.0, %v562
  %vm564 = vcmask 138312
  %v565 = vsel %vm564, %v516, -inf
  %566 = vmax.xlane.f32.xlu0 %v565
  %v567 = vpop.xlane.xlu0 %566
  %v568 = vsub.f32 %v516, %v567
  %v569 = vmul.f32 %v568, 1.442695
  %v570 = vpow.pop %v569
  %572 = vrot.lane.b32.xlu0 %v570, 119
  %v573 = vpop.permute.xlu0 %572
  %v575 = vsel %vm531, %v573, 0.0
  %576 = vadd.xlane.f32.xlu0 %v575
  %v577 = vpop.xlane.xlu0 %576
  %v578 = vlog2.pop %v577
  %v579 = vmul.f32 %v578, 0.6931472
  %v580 = vsub.f32 %v568, %v579
  %v581 = vrcp.pop %v577
  %v582 = vmul.f32 %v570, %v581
  %583 = vset.pattern.permute.xlu0 1
  %584 = vperm.xlu0 %583, %v517
  %v585 = vpop.permute.xlu0 %584
  %vm586 = vcmp.eq.s32.totalorder %v519, %v585
  %v587 = vsel %vm586, 1, 0
  %v588 = vcvt.s32.f32 %v587
  %590 = vrot.lane.b32.xlu0 %v580, 119
  %v591 = vpop.permute.xlu0 %590
  %v593 = vmul.f32 %v588, %v591
  %v594 = vsel %vm531, %v593, 0.0
  %595 = vadd.xlane.f32.xlu0 %v594
  %v596 = vpop.xlane.xlu0 %595
  %v597 = vadd.f32 %v554, %v596
  %v598 = vmul.f32 %v582, %v580
  %600 = vrot.lane.b32.xlu0 %v598, 119
  %v601 = vpop.permute.xlu0 %600
  %v603 = vsel %vm531, %v601, 0.0
  %604 = vadd.xlane.f32.xlu0 %v603
  %v605 = vpop.xlane.xlu0 %604
  %v606 = vsub.f32 %v563, %v605
  %vm607 = vcmask 203912
  %v608 = vsel %vm607, %v516, -inf
  %609 = vmax.xlane.f32.xlu0 %v608
  %v610 = vpop.xlane.xlu0 %609
  %v611 = vsub.f32 %v516, %v610
  %v612 = vmul.f32 %v611, 1.442695
  %v613 = vpow.pop %v612
  %615 = vrot.lane.b32.xlu0 %v613, 111
  %v616 = vpop.permute.xlu0 %615
  %v618 = vsel %vm531, %v616, 0.0
  %619 = vadd.xlane.f32.xlu0 %v618
  %v620 = vpop.xlane.xlu0 %619
  %v621 = vlog2.pop %v620
  %v622 = vmul.f32 %v621, 0.6931472
  %v623 = vsub.f32 %v611, %v622
  %v624 = vrcp.pop %v620
  %v625 = vmul.f32 %v613, %v624
  %626 = vset.pattern.permute.xlu0 2
  %627 = vperm.xlu0 %626, %v517
  %v628 = vpop.permute.xlu0 %627
  %vm629 = vcmp.eq.s32.totalorder %v519, %v628
  %v630 = vsel %vm629, 1, 0
  %v631 = vcvt.s32.f32 %v630
  %633 = vrot.lane.b32.xlu0 %v623, 111
  %v634 = vpop.permute.xlu0 %633
  %v636 = vmul.f32 %v631, %v634
  %v637 = vsel %vm531, %v636, 0.0
  %638 = vadd.xlane.f32.xlu0 %v637
  %v639 = vpop.xlane.xlu0 %638
  %v640 = vadd.f32 %v597, %v639
  %v641 = vmul.f32 %v625, %v623
  %643 = vrot.lane.b32.xlu0 %v641, 111
  %v644 = vpop.permute.xlu0 %643
  %v646 = vsel %vm531, %v644, 0.0
  %647 = vadd.xlane.f32.xlu0 %v646
  %v648 = vpop.xlane.xlu0 %647
  %v649 = vsub.f32 %v606, %v648
  %vm650 = vcmask 7168
  %v651 = vsel %vm650, %v516, %v640
  %vm652 = vcmask 15360
  %v653 = vsel %vm652, %v651, %v649
  %vm654 = vcmask 23552
  %v655 = vsel %vm654, %v653, 0.0
  %656 = vst [vmem:[%s9] sm:$0xff] %v655
  %658 = vrot.lane.b32.xlu0 %v493, 32
  %v659 = vpop.permute.xlu0 %658
  %v661 = vsel %vm107, %v659, 0.0
  %662 = vst [vmem:[%s9 + $0x2] sm:$0xc0] %v661
  %664 = vrot.lane.b32.xlu0 %v487, 96
  %v665 = vpop.permute.xlu0 %664
  %v667 = vsel %vm107, %v665, 0.0
  %668 = vst [vmem:[%s9 + $0x4] sm:$0xc0] %v667
  // Predicated region
  $region38: #{agent_forward.1} parent=0 // pred_check
    _
  $region39: #{agent_forward.1} parent=0 // pred_check_branch
    %670 = sbr.rel (0) target = $region41
  $region40: #{agent_forward.1} parent=0 // pred_region
    _
  $region41: #{agent_forward.1} parent=0 // pred_fallthru
    _
  // Predicated region
  $region42: #{agent_forward.1} parent=0 // pred_check
    _
  $region43: #{agent_forward.1} parent=0 // pred_check_branch
    %672 = sbr.rel (0) target = $region45
  $region44: #{agent_forward.1} parent=0 // pred_region
    _
  $region45: #{agent_forward.1} parent=0 // pred_fallthru
    _

</llo_original>
